<compile_context>
chip_gen: v7x
topology: tpu7x:2x2x1
jax: 0.10.0
libtpu: 0.0.40
codegen_flags: <defaults>
</compile_context>

<pallas_src>
import functools
import math

import jax
import jax.numpy as jnp
from jax.experimental import pallas as pl
from jax.experimental.pallas import tpu as pltpu

BN_EPS = 1e-5
NEG_SLOPE = 0.2


def _round_up(v, m):
    return (v + m - 1) // m * m


def _bn_leaky(h, gamma, beta, batch):
    """Training-mode BatchNorm1d (biased batch variance, eps=1e-5) with a folded
    affine, followed by LeakyReLU(0.2).  All math in f32."""
    inv_b = 1.0 / float(batch)
    s = jnp.sum(h, axis=0, keepdims=True)
    ss = jnp.sum(h * h, axis=0, keepdims=True)
    mean = s * inv_b
    var = ss * inv_b - mean * mean
    scale = gamma * jax.lax.rsqrt(var + BN_EPS)
    shift = beta - mean * scale
    hn = h * scale + shift
    return jnp.where(hn > 0, hn, NEG_SLOPE * hn)


def _mlp_block_kernel(x_ref, w1_ref, g1_ref, be1_ref, w2_ref, g2_ref, be2_ref,
                      o_ref, h1_ref, acc_ref, *, b_real, b_pad, mm_dtype):
    n = pl.program_id(0)   # output-feature tile of fc2 (outer)
    k = pl.program_id(1)   # hidden-feature tile        (inner, fc2 reduction axis)

    # fc1 + bn1 + LeakyReLU for this hidden tile: computed once (first n pass),
    # cached in VMEM scratch, reused for every output tile n.
    @pl.when(n == 0)
    def _():
        h = jnp.dot(x_ref[...].astype(mm_dtype), w1_ref[...].astype(mm_dtype),
                    preferred_element_type=jnp.float32)
        h = _bn_leaky(h, g1_ref[...], be1_ref[...], b_real)
        if b_pad > b_real:
            # Zero padded batch rows so downstream fc2 / BN2 sums stay exact.
            rows = jax.lax.broadcasted_iota(jnp.int32, (b_pad, 1), 0)
            h = jnp.where(rows < b_real, h, 0.0)
        h1_ref[k] = h.astype(h1_ref.dtype)

    # fc2 accumulation over hidden tiles.
    @pl.when(k == 0)
    def _():
        acc_ref[...] = jnp.zeros_like(acc_ref)

    acc_ref[...] += jnp.dot(h1_ref[k].astype(mm_dtype), w2_ref[...].astype(mm_dtype),
                            preferred_element_type=jnp.float32)

    # bn2 + LeakyReLU + lane-dense store on the last hidden tile.
    @pl.when(k == pl.num_programs(1) - 1)
    def _():
        out = _bn_leaky(acc_ref[...], g2_ref[...], be2_ref[...], b_real)
        o_ref[...] = out.astype(o_ref.dtype)


@functools.partial(jax.jit, static_argnames=("tk", "tn", "mm_dtype"))
def mlp_block(x, w1_t, g1, be1, w2_t, g2, be2, *, tk=128, tn=128,
              mm_dtype=jnp.float32):
    """x: (B, D_in); w1_t: (D_in, D_hid); w2_t: (D_hid, D_out); BN params: (1, D)."""
    B, D_in = x.shape
    D_hid = w1_t.shape[1]
    D_out = w2_t.shape[1]
    assert w1_t.shape[0] == D_in and w2_t.shape[0] == D_hid
    assert tk % 128 == 0 and tn % 128 == 0

    B_pad = _round_up(B, 8)
    D_in_pad = _round_up(D_in, 128)
    D_hid_pad = _round_up(D_hid, tk)
    D_out_pad = _round_up(D_out, tn)
    num_k = D_hid_pad // tk
    num_n = D_out_pad // tn

    f32 = jnp.float32
    xp = jnp.zeros((B_pad, D_in_pad), f32).at[:B, :D_in].set(x.astype(f32))
    w1p = jnp.zeros((D_in_pad, D_hid_pad), f32).at[:D_in, :D_hid].set(w1_t.astype(f32))
    w2p = jnp.zeros((D_hid_pad, D_out_pad), f32).at[:D_hid, :D_out].set(w2_t.astype(f32))
    # BN affine padded with zeros -> padded feature columns stay exactly 0 end-to-end.
    g1p = jnp.zeros((1, D_hid_pad), f32).at[:, :D_hid].set(g1.reshape(1, -1).astype(f32))
    be1p = jnp.zeros((1, D_hid_pad), f32).at[:, :D_hid].set(be1.reshape(1, -1).astype(f32))
    g2p = jnp.zeros((1, D_out_pad), f32).at[:, :D_out].set(g2.reshape(1, -1).astype(f32))
    be2p = jnp.zeros((1, D_out_pad), f32).at[:, :D_out].set(be2.reshape(1, -1).astype(f32))

    kernel = functools.partial(_mlp_block_kernel, b_real=B, b_pad=B_pad,
                               mm_dtype=mm_dtype)

    out_p = pl.pallas_call(
        kernel,
        out_shape=jax.ShapeDtypeStruct((B_pad, D_out_pad), f32),
        grid_spec=pltpu.PrefetchScalarGridSpec(
            num_scalar_prefetch=0,
            grid=(num_n, num_k),
            in_specs=[
                pl.BlockSpec((B_pad, D_in_pad), lambda n, k: (0, 0)),   # x (stays resident)
                pl.BlockSpec((D_in_pad, tk), lambda n, k: (0, k)),      # W1^T hidden-slice
                pl.BlockSpec((1, tk), lambda n, k: (0, k)),             # gamma1 slice
                pl.BlockSpec((1, tk), lambda n, k: (0, k)),             # beta1 slice
                pl.BlockSpec((tk, tn), lambda n, k: (k, n)),            # W2^T (k, n) tile
                pl.BlockSpec((1, tn), lambda n, k: (0, n)),             # gamma2 slice
                pl.BlockSpec((1, tn), lambda n, k: (0, n)),             # beta2 slice
            ],
            out_specs=pl.BlockSpec((B_pad, tn), lambda n, k: (0, n)),
            scratch_shapes=[
                pltpu.VMEM((num_k, B_pad, tk), mm_dtype),  # cached bn1(lrelu(fc1(x)))
                pltpu.VMEM((B_pad, tn), jnp.float32),      # fc2 accumulator
            ],
        ),
        # n must stay sequential: the fc1/bn1 cache is filled on the first n pass.
        # TODO(synk): to mark n "parallel" for v7x megacore, split fc1+bn1 into its own kernel.
        compiler_params=pltpu.CompilerParams(
            dimension_semantics=("arbitrary", "arbitrary")),
    )(xp, w1p, g1p, be1p, w2p, g2p, be2p)

    return out_p[:B, :D_out]


# ------------------------- init helpers + reference -------------------------

def kaiming_uniform(key, fan_out, fan_in):
    # nn.init.kaiming_uniform_ with a=0: bound = sqrt(6 / fan_in)
    bound = math.sqrt(6.0 / fan_in)
    return jax.random.uniform(key, (fan_out, fan_in), jnp.float32, -bound, bound)


def linear_bias(key, fan_in, fan_out):
    # nn.Linear default bias init: U(-1/sqrt(fan_in), 1/sqrt(fan_in))
    bound = 1.0 / math.sqrt(fan_in)
    return jax.random.uniform(key, (1, fan_out), jnp.float32, -bound, bound)


def reference(x, w1_t, b1, g1, be1, w2_t, b2, g2, be2):
    """Pure-JAX PyTorch-style reference WITH the Linear biases (they cancel in BN)."""
    def bn_lrelu(h, g, b):
        m = h.mean(axis=0, keepdims=True)
        v = ((h - m) ** 2).mean(axis=0, keepdims=True)
        hn = (h - m) / jnp.sqrt(v + BN_EPS) * g + b
        return jnp.where(hn > 0, hn, NEG_SLOPE * hn)

    h = bn_lrelu(x @ w1_t + b1, g1, be1)
    h = bn_lrelu(h @ w2_t + b2, g2, be2)
    return h


if __name__ == "__main__":
    B, D_in, D_out = 8, 16, 32

    key = jax.random.PRNGKey(0)
    (kx, kw1, kb1, kw2, kb2, kg1, kbe1, kg2, kbe2) = jax.random.split(key, 9)

    x = jax.random.normal(kx, (B, D_in), jnp.float32)

    w1 = kaiming_uniform(kw1, D_out, D_in)          # (D_out, D_in) as in PyTorch
    b1 = linear_bias(kb1, D_in, D_out)              # used by reference only
    w2 = kaiming_uniform(kw2, D_out, D_out)
    b2 = linear_bias(kb2, D_out, D_out)             # used by reference only

    g1 = jax.random.uniform(kg1, (1, D_out), jnp.float32, 0.5, 1.5)
    be1 = 0.1 * jax.random.normal(kbe1, (1, D_out), jnp.float32)
    g2 = jax.random.uniform(kg2, (1, D_out), jnp.float32, 0.5, 1.5)
    be2 = 0.1 * jax.random.normal(kbe2, (1, D_out), jnp.float32)

    # pre-transpose weights for lane-dense x @ W in the kernel
    w1_t = w1.T
    w2_t = w2.T

    # Test 1: batch already a multiple of 8.
    out = mlp_block(x, w1_t, g1, be1, w2_t, g2, be2)
    out = jax.block_until_ready(out)
    ref = reference(x, w1_t, b1, g1, be1, w2_t, b2, g2, be2)
    assert out.shape == (B, D_out)
    err = float(jnp.max(jnp.abs(out - ref)))
    assert err < 5e-4, f"test1 max abs diff {err}"

    # Test 2: ragged batch (exercises the padded-row masking path).
    x2 = x[:6]
    out2 = mlp_block(x2, w1_t, g1, be1, w2_t, g2, be2)
    out2 = jax.block_until_ready(out2)
    ref2 = reference(x2, w1_t, b1, g1, be1, w2_t, b2, g2, be2)
    assert out2.shape == (6, D_out)
    err2 = float(jnp.max(jnp.abs(out2 - ref2)))
    assert err2 < 5e-4, f"test2 max abs diff {err2}"

    print("KERNEL_OK")
</pallas_src>

<mosaic_0001>
module attributes {stable_mosaic.version = 11 : i64} {
  func.func @_mlp_block_kernel(%arg0: i32, %arg1: i32, %arg2: memref<8x128xf32, #tpu.memory_space<vmem>>, %arg3: memref<128x128xf32, #tpu.memory_space<vmem>>, %arg4: memref<1x128xf32, #tpu.memory_space<vmem>>, %arg5: memref<1x128xf32, #tpu.memory_space<vmem>>, %arg6: memref<128x128xf32, #tpu.memory_space<vmem>>, %arg7: memref<1x128xf32, #tpu.memory_space<vmem>>, %arg8: memref<1x128xf32, #tpu.memory_space<vmem>>, %arg9: memref<8x128xf32, #tpu.memory_space<vmem>>, %arg10: memref<1x8x128xf32, #tpu.memory_space<vmem>>, %arg11: memref<8x128xf32, #tpu.memory_space<vmem>>) attributes {dimension_semantics = [#tpu.dimension_semantics<arbitrary>, #tpu.dimension_semantics<arbitrary>], iteration_bounds = array<i64: 1, 1>, scalar_prefetch = 0 : i64, scratch_operands = 2 : i64, tpu.core_type = #tpu.core_type<tc>, window_params = [{pipeline_mode = #tpu.pipeline_mode<synchronous>, transform_indices = @transform_0, window_bounds = array<i64: 8, 128>}, {transform_indices = @transform_1, window_bounds = array<i64: 128, 128>}, {transform_indices = @transform_2, window_bounds = array<i64: 1, 128>}, {transform_indices = @transform_3, window_bounds = array<i64: 1, 128>}, {transform_indices = @transform_4, window_bounds = array<i64: 128, 128>}, {transform_indices = @transform_5, window_bounds = array<i64: 1, 128>}, {transform_indices = @transform_6, window_bounds = array<i64: 1, 128>}, {transform_indices = @transform_7, window_bounds = array<i64: 8, 128>}]} {
    %c0_i32 = arith.constant 0 : i32
    %0 = arith.cmpi eq, %arg0, %c0_i32 : i32
    %1 = arith.extui %0 : i1 to i32
    %c0_i32_0 = arith.constant 0 : i32
    %2 = arith.cmpi ne, %1, %c0_i32_0 : i32
    scf.if %2 {
      %c0_12 = arith.constant 0 : index
      %c0_13 = arith.constant 0 : index
      %17 = vector.load %arg2[%c0_12, %c0_13] : memref<8x128xf32, #tpu.memory_space<vmem>>, vector<8x128xf32>
      %c0_14 = arith.constant 0 : index
      %c0_15 = arith.constant 0 : index
      %18 = vector.load %arg3[%c0_14, %c0_15] : memref<128x128xf32, #tpu.memory_space<vmem>>, vector<128x128xf32>
      %cst_16 = arith.constant dense<0.000000e+00> : vector<8x128xf32>
      %19 = tpu.matmul %17, %18, %cst_16 {dimension_numbers = #tpu.dot_dimension_numbers<[1], [0], [0], [1], [0, 0, 1, 1], [], []>} : vector<8x128xf32>, vector<128x128xf32>, vector<8x128xf32> -> vector<8x128xf32>
      %c0_17 = arith.constant 0 : index
      %c0_18 = arith.constant 0 : index
      %20 = vector.load %arg4[%c0_17, %c0_18] : memref<1x128xf32, #tpu.memory_space<vmem>>, vector<1x128xf32>
      %c0_19 = arith.constant 0 : index
      %c0_20 = arith.constant 0 : index
      %21 = vector.load %arg5[%c0_19, %c0_20] : memref<1x128xf32, #tpu.memory_space<vmem>>, vector<1x128xf32>
      %cst_21 = arith.constant dense<0.000000e+00> : vector<128xf32>
      %22 = vector.multi_reduction <add>, %19, %cst_21 [0] : vector<8x128xf32> to vector<128xf32>
      %23 = vector.shape_cast %22 : vector<128xf32> to vector<1x128xf32>
      %24 = arith.mulf %19, %19 : vector<8x128xf32>
      %cst_22 = arith.constant dense<0.000000e+00> : vector<128xf32>
      %25 = vector.multi_reduction <add>, %24, %cst_22 [0] : vector<8x128xf32> to vector<128xf32>
      %26 = vector.shape_cast %25 : vector<128xf32> to vector<1x128xf32>
      %cst_23 = arith.constant 1.250000e-01 : f32
      %27 = vector.broadcast %cst_23 : f32 to vector<1x128xf32>
      %28 = arith.mulf %23, %27 : vector<1x128xf32>
      %cst_24 = arith.constant 1.250000e-01 : f32
      %29 = vector.broadcast %cst_24 : f32 to vector<1x128xf32>
      %30 = arith.mulf %26, %29 : vector<1x128xf32>
      %31 = arith.mulf %28, %28 : vector<1x128xf32>
      %32 = arith.subf %30, %31 : vector<1x128xf32>
      %cst_25 = arith.constant 9.99999974E-6 : f32
      %33 = vector.broadcast %cst_25 : f32 to vector<1x128xf32>
      %34 = arith.addf %32, %33 : vector<1x128xf32>
      %35 = math.rsqrt %34 : vector<1x128xf32>
      %36 = arith.mulf %20, %35 : vector<1x128xf32>
      %37 = arith.mulf %28, %36 : vector<1x128xf32>
      %38 = arith.subf %21, %37 : vector<1x128xf32>
      %39 = vector.broadcast %36 : vector<1x128xf32> to vector<8x128xf32>
      %40 = arith.mulf %19, %39 : vector<8x128xf32>
      %41 = vector.broadcast %38 : vector<1x128xf32> to vector<8x128xf32>
      %42 = arith.addf %40, %41 : vector<8x128xf32>
      %cst_26 = arith.constant 0.000000e+00 : f32
      %43 = vector.broadcast %cst_26 : f32 to vector<8x128xf32>
      %44 = arith.cmpf ogt, %42, %43 : vector<8x128xf32>
      %cst_27 = arith.constant 2.000000e-01 : f32
      %45 = vector.broadcast %cst_27 : f32 to vector<8x128xf32>
      %46 = arith.mulf %45, %42 : vector<8x128xf32>
      %47 = arith.select %44, %42, %46 : vector<8x128xi1>, vector<8x128xf32>
      %48 = arith.index_cast %arg1 : i32 to index
      %c0_28 = arith.constant 0 : index
      %c0_29 = arith.constant 0 : index
      %49 = vector.load %arg10[%48, %c0_28, %c0_29] : memref<1x8x128xf32, #tpu.memory_space<vmem>>, vector<1x8x128xf32>
      %50 = vector.shape_cast %49 : vector<1x8x128xf32> to vector<8x128xf32>
      %51 = vector.shape_cast %47 : vector<8x128xf32> to vector<1x8x128xf32>
      tpu.vector_store %arg10[%48, %c0_28, %c0_29], %51 {strides = array<i32>} : memref<1x8x128xf32, #tpu.memory_space<vmem>>, vector<1x8x128xf32>,
    } else {
    }
    %c0_i32_1 = arith.constant 0 : i32
    %3 = arith.cmpi eq, %arg1, %c0_i32_1 : i32
    %4 = arith.extui %3 : i1 to i32
    %c0_i32_2 = arith.constant 0 : i32
    %5 = arith.cmpi ne, %4, %c0_i32_2 : i32
    scf.if %5 {
      %cst_12 = arith.constant 0.000000e+00 : f32
      %17 = vector.broadcast %cst_12 : f32 to vector<8x128xf32>
      %c0_13 = arith.constant 0 : index
      %c0_14 = arith.constant 0 : index
      %18 = vector.load %arg11[%c0_13, %c0_14] : memref<8x128xf32, #tpu.memory_space<vmem>>, vector<8x128xf32>
      tpu.vector_store %arg11[%c0_13, %c0_14], %17 {strides = array<i32>} : memref<8x128xf32, #tpu.memory_space<vmem>>, vector<8x128xf32>,
    } else {
    }
    %c0 = arith.constant 0 : index
    %c0_3 = arith.constant 0 : index
    %6 = vector.load %arg11[%c0, %c0_3] : memref<8x128xf32, #tpu.memory_space<vmem>>, vector<8x128xf32>
    %7 = arith.index_cast %arg1 : i32 to index
    %c0_4 = arith.constant 0 : index
    %c0_5 = arith.constant 0 : index
    %8 = vector.load %arg10[%7, %c0_4, %c0_5] : memref<1x8x128xf32, #tpu.memory_space<vmem>>, vector<1x8x128xf32>
    %9 = vector.shape_cast %8 : vector<1x8x128xf32> to vector<8x128xf32>
    %c0_6 = arith.constant 0 : index
    %c0_7 = arith.constant 0 : index
    %10 = vector.load %arg6[%c0_6, %c0_7] : memref<128x128xf32, #tpu.memory_space<vmem>>, vector<128x128xf32>
    %cst = arith.constant dense<0.000000e+00> : vector<8x128xf32>
    %11 = tpu.matmul %9, %10, %cst {dimension_numbers = #tpu.dot_dimension_numbers<[1], [0], [0], [1], [0, 0, 1, 1], [], []>} : vector<8x128xf32>, vector<128x128xf32>, vector<8x128xf32> -> vector<8x128xf32>
    %12 = arith.addf %6, %11 : vector<8x128xf32>
    %c0_8 = arith.constant 0 : index
    %c0_9 = arith.constant 0 : index
    %13 = vector.load %arg11[%c0_8, %c0_9] : memref<8x128xf32, #tpu.memory_space<vmem>>, vector<8x128xf32>
    tpu.vector_store %arg11[%c0_8, %c0_9], %12 {strides = array<i32>} : memref<8x128xf32, #tpu.memory_space<vmem>>, vector<8x128xf32>,
    %c0_i32_10 = arith.constant 0 : i32
    %14 = arith.cmpi eq, %arg1, %c0_i32_10 : i32
    %15 = arith.extui %14 : i1 to i32
    %c0_i32_11 = arith.constant 0 : i32
    %16 = arith.cmpi ne, %15, %c0_i32_11 : i32
    scf.if %16 {
      %c0_12 = arith.constant 0 : index
      %c0_13 = arith.constant 0 : index
      %17 = vector.load %arg11[%c0_12, %c0_13] : memref<8x128xf32, #tpu.memory_space<vmem>>, vector<8x128xf32>
      %c0_14 = arith.constant 0 : index
      %c0_15 = arith.constant 0 : index
      %18 = vector.load %arg7[%c0_14, %c0_15] : memref<1x128xf32, #tpu.memory_space<vmem>>, vector<1x128xf32>
      %c0_16 = arith.constant 0 : index
      %c0_17 = arith.constant 0 : index
      %19 = vector.load %arg8[%c0_16, %c0_17] : memref<1x128xf32, #tpu.memory_space<vmem>>, vector<1x128xf32>
      %cst_18 = arith.constant dense<0.000000e+00> : vector<128xf32>
      %20 = vector.multi_reduction <add>, %17, %cst_18 [0] : vector<8x128xf32> to vector<128xf32>
      %21 = vector.shape_cast %20 : vector<128xf32> to vector<1x128xf32>
      %22 = arith.mulf %17, %17 : vector<8x128xf32>
      %cst_19 = arith.constant dense<0.000000e+00> : vector<128xf32>
      %23 = vector.multi_reduction <add>, %22, %cst_19 [0] : vector<8x128xf32> to vector<128xf32>
      %24 = vector.shape_cast %23 : vector<128xf32> to vector<1x128xf32>
      %cst_20 = arith.constant 1.250000e-01 : f32
      %25 = vector.broadcast %cst_20 : f32 to vector<1x128xf32>
      %26 = arith.mulf %21, %25 : vector<1x128xf32>
      %cst_21 = arith.constant 1.250000e-01 : f32
      %27 = vector.broadcast %cst_21 : f32 to vector<1x128xf32>
      %28 = arith.mulf %24, %27 : vector<1x128xf32>
      %29 = arith.mulf %26, %26 : vector<1x128xf32>
      %30 = arith.subf %28, %29 : vector<1x128xf32>
      %cst_22 = arith.constant 9.99999974E-6 : f32
      %31 = vector.broadcast %cst_22 : f32 to vector<1x128xf32>
      %32 = arith.addf %30, %31 : vector<1x128xf32>
      %33 = math.rsqrt %32 : vector<1x128xf32>
      %34 = arith.mulf %18, %33 : vector<1x128xf32>
      %35 = arith.mulf %26, %34 : vector<1x128xf32>
      %36 = arith.subf %19, %35 : vector<1x128xf32>
      %37 = vector.broadcast %34 : vector<1x128xf32> to vector<8x128xf32>
      %38 = arith.mulf %17, %37 : vector<8x128xf32>
      %39 = vector.broadcast %36 : vector<1x128xf32> to vector<8x128xf32>
      %40 = arith.addf %38, %39 : vector<8x128xf32>
      %cst_23 = arith.constant 0.000000e+00 : f32
      %41 = vector.broadcast %cst_23 : f32 to vector<8x128xf32>
      %42 = arith.cmpf ogt, %40, %41 : vector<8x128xf32>
      %cst_24 = arith.constant 2.000000e-01 : f32
      %43 = vector.broadcast %cst_24 : f32 to vector<8x128xf32>
      %44 = arith.mulf %43, %40 : vector<8x128xf32>
      %45 = arith.select %42, %40, %44 : vector<8x128xi1>, vector<8x128xf32>
      %c0_25 = arith.constant 0 : index
      %c0_26 = arith.constant 0 : index
      %46 = vector.load %arg9[%c0_25, %c0_26] : memref<8x128xf32, #tpu.memory_space<vmem>>, vector<8x128xf32>
      tpu.vector_store %arg9[%c0_25, %c0_26], %45 {strides = array<i32>} : memref<8x128xf32, #tpu.memory_space<vmem>>, vector<8x128xf32>,
    } else {
    }
    return
  }
  func.func @transform_0(%arg0: i32, %arg1: i32) -> (i32, i32) {
    %c0_i32 = arith.constant 0 : i32
    %c0_i32_0 = arith.constant 0 : i32
    %c0_i32_1 = arith.constant 0 : i32
    return %c0_i32, %c0_i32_0 : i32, i32
  }
  func.func @transform_1(%arg0: i32, %arg1: i32) -> (i32, i32) {
    %c0_i32 = arith.constant 0 : i32
    %c0_i32_0 = arith.constant 0 : i32
    return %c0_i32, %arg1 : i32, i32
  }
  func.func @transform_2(%arg0: i32, %arg1: i32) -> (i32, i32) {
    %c0_i32 = arith.constant 0 : i32
    %c0_i32_0 = arith.constant 0 : i32
    return %c0_i32, %arg1 : i32, i32
  }
  func.func @transform_3(%arg0: i32, %arg1: i32) -> (i32, i32) {
    %c0_i32 = arith.constant 0 : i32
    %c0_i32_0 = arith.constant 0 : i32
    return %c0_i32, %arg1 : i32, i32
  }
  func.func @transform_4(%arg0: i32, %arg1: i32) -> (i32, i32) {
    %c0_i32 = arith.constant 0 : i32
    return %arg1, %arg0 : i32, i32
  }
  func.func @transform_5(%arg0: i32, %arg1: i32) -> (i32, i32) {
    %c0_i32 = arith.constant 0 : i32
    %c0_i32_0 = arith.constant 0 : i32
    return %c0_i32, %arg0 : i32, i32
  }
  func.func @transform_6(%arg0: i32, %arg1: i32) -> (i32, i32) {
    %c0_i32 = arith.constant 0 : i32
    %c0_i32_0 = arith.constant 0 : i32
    return %c0_i32, %arg0 : i32, i32
  }
  func.func @transform_7(%arg0: i32, %arg1: i32) -> (i32, i32) {
    %c0_i32 = arith.constant 0 : i32
    %c0_i32_0 = arith.constant 0 : i32
    return %c0_i32, %arg0 : i32, i32
  }
}

</mosaic_0001>

<llo_original>
// kernel: mlp_block.1
$region0: #{mlp_block.1}
  #allocation0 [shape = 'u32[]', space=smem, size = 0x4, offset = 0x4, fixed_abs, tag = 'smem constant byte address 0x4 - core index']
  #allocation1 [shape = 'u32[144,128]{1,0:T(1,128)}', space=vmem, size = 0x12000, scoped, tag = 'internal scratch']
  #allocation2 [shape = 'f32[1,8,128]{2,1,0:T(8,128)}', space=vmem, size = 0x1000, scoped, tag = 'scratch operand']
  #allocation3 [shape = 'f32[8,128]{1,0:T(8,128)}', space=vmem, size = 0x1000, scoped, tag = 'scratch operand']
  %s0 = inlined_call_operand.vmem [shape: f32[8,128], index: 0, kind: input, shape index: {}]
  %s1 = inlined_call_operand.vmem [shape: f32[128,128], index: 1, kind: input, shape index: {}]
  %s2 = inlined_call_operand.vmem [shape: f32[1,128], index: 2, kind: input, shape index: {}]
  %s3 = inlined_call_operand.vmem [shape: f32[1,128], index: 3, kind: input, shape index: {}]
  %s4 = inlined_call_operand.vmem [shape: f32[128,128], index: 4, kind: input, shape index: {}]
  %s5 = inlined_call_operand.vmem [shape: f32[1,128], index: 5, kind: input, shape index: {}]
  %s6 = inlined_call_operand.vmem [shape: f32[1,128], index: 6, kind: input, shape index: {}]
  %s7 = inlined_call_operand.hbm [shape: f32[8,128], index: 7, kind: output, shape index: {}]
  %s8 = sld [smem:[#allocation0]]
  $region50: #{mlp_block.1} parent=0
    _
  %s10 = ssub.s32 1, %s8
  %s11 = scalar_select 0, %s10, %s8
  $region1: #{mlp_block.1} parent=0
    #allocation4 [shape = 'u8[4096]{0}', space=vmem, size = 0x1000, scoped, tag = 'output window, operand 0, single buffered']
    #allocation5 [shape = 's32[1]{0}', space=sflag, size = 0x4, scoped, tag = 'scoped memory for mlp_block.1']
    %12 = vsyncpa [#allocation5], 0
    // Predicated region
    $region2: #{mlp_block.1} parent=1 // pred_check
      _
    $region3: #{mlp_block.1} parent=1 // pred_check_branch
      %14 = sbr.rel (0) target = $region5
    $region4: #{mlp_block.1} parent=1 // pred_region
      _
    $region5: #{mlp_block.1} parent=1 // pred_fallthru
      _
    // Predicated region
    $region6: #{mlp_block.1} parent=1 // pred_check
      _
    $region7: #{mlp_block.1} parent=1 // pred_check_branch
      %16 = sbr.rel (0) target = $region9
    $region8: #{mlp_block.1} parent=1 // pred_region
      _
    $region9: #{mlp_block.1} parent=1 // pred_fallthru
      _
    // Predicated region
    $region10: #{mlp_block.1} parent=1 // pred_check
      _
    $region11: #{mlp_block.1} parent=1 // pred_check_branch
      %18 = sbr.rel (0) target = $region13
    $region12: #{mlp_block.1} parent=1 // pred_region
      _
    $region13: #{mlp_block.1} parent=1 // pred_fallthru
      _
    // Predicated region
    $region14: #{mlp_block.1} parent=1 // pred_check
      _
    $region15: #{mlp_block.1} parent=1 // pred_check_branch
      %20 = sbr.rel (0) target = $region17
    $region16: #{mlp_block.1} parent=1 // pred_region
      _
    $region17: #{mlp_block.1} parent=1 // pred_fallthru
      _
    // Predicated region
    $region18: #{mlp_block.1} parent=1 // pred_check
      _
    $region19: #{mlp_block.1} parent=1 // pred_check_branch
      %22 = sbr.rel (0) target = $region21
    $region20: #{mlp_block.1} parent=1 // pred_region
      _
    $region21: #{mlp_block.1} parent=1 // pred_fallthru
      _
    // Predicated region
    $region22: #{mlp_block.1} parent=1 // pred_check
      _
    $region23: #{mlp_block.1} parent=1 // pred_check_branch
      %24 = sbr.rel (0) target = $region25
    $region24: #{mlp_block.1} parent=1 // pred_region
      _
    $region25: #{mlp_block.1} parent=1 // pred_fallthru
      _
    // Predicated region
    $region26: #{mlp_block.1} parent=1 // pred_check
      _
    $region27: #{mlp_block.1} parent=1 // pred_check_branch
      %26 = sbr.rel (0) target = $region29
    $region28: #{mlp_block.1} parent=1 // pred_region
      _
    $region29: #{mlp_block.1} parent=1 // pred_fallthru
      _
    %p27 = scmp.eq.s32.totalorder 0, 0
    // Predicated region
    $region30: #{mlp_block.1} parent=1 // pred_check
      %p28 = pneg %p27
    $region31: #{mlp_block.1} parent=1 // pred_check_branch
      %30 = sbr.rel (%p28) target = $region33
    $region32: #{mlp_block.1} parent=1 // pred_region
      %v31 = vld [vmem:[%s0] sm:$0xff]
      %v32 = vld [vmem:[%s1] sm:$0xff]
      %v33 = vld [vmem:[%s1 + $0x8] sm:$0xff]
      %v34 = vld [vmem:[%s1 + $0x10] sm:$0xff]
      %v35 = vld [vmem:[%s1 + $0x18] sm:$0xff]
      %v36 = vld [vmem:[%s1 + $0x20] sm:$0xff]
      %v37 = vld [vmem:[%s1 + $0x28] sm:$0xff]
      %v38 = vld [vmem:[%s1 + $0x30] sm:$0xff]
      %v39 = vld [vmem:[%s1 + $0x38] sm:$0xff]
      %v40 = vld [vmem:[%s1 + $0x40] sm:$0xff]
      %v41 = vld [vmem:[%s1 + $0x48] sm:$0xff]
      %v42 = vld [vmem:[%s1 + $0x50] sm:$0xff]
      %v43 = vld [vmem:[%s1 + $0x58] sm:$0xff]
      %v44 = vld [vmem:[%s1 + $0x60] sm:$0xff]
      %v45 = vld [vmem:[%s1 + $0x68] sm:$0xff]
      %v46 = vld [vmem:[%s1 + $0x70] sm:$0xff]
      %v47 = vld [vmem:[%s1 + $0x78] sm:$0xff]
      %48 = vmatprep.subr.mxu0 0.0
      %49 = vmatpush1.msra.mxu0 %v32
      %50 = vmatprep.subr.mxu0 0.0
      %51 = vmatpush1.msra.mxu0 %v33
      %52 = vmatprep.subr.mxu0 0.0
      %53 = vmatpush1.msra.mxu0 %v34
      %54 = vmatprep.subr.mxu0 0.0
      %55 = vmatpush1.msra.mxu0 %v35
      %56 = vmatprep.subr.mxu0 0.0
      %57 = vmatpush1.msra.mxu0 %v36
      %58 = vmatprep.subr.mxu0 0.0
      %59 = vmatpush1.msra.mxu0 %v37
      %60 = vmatprep.subr.mxu0 0.0
      %61 = vmatpush1.msra.mxu0 %v38
      %62 = vmatprep.subr.mxu0 0.0
      %63 = vmatpush1.msra.mxu0 %v39
      %64 = vmatprep.subr.mxu0 0.0
      %65 = vmatpush1.msra.mxu0 %v40
      %66 = vmatprep.subr.mxu0 0.0
      %67 = vmatpush1.msra.mxu0 %v41
      %68 = vmatprep.subr.mxu0 0.0
      %69 = vmatpush1.msra.mxu0 %v42
      %70 = vmatprep.subr.mxu0 0.0
      %71 = vmatpush1.msra.mxu0 %v43
      %72 = vmatprep.subr.mxu0 0.0
      %73 = vmatpush1.msra.mxu0 %v44
      %74 = vmatprep.subr.mxu0 0.0
      %75 = vmatpush1.msra.mxu0 %v45
      %76 = vmatprep.subr.mxu0 0.0
      %77 = vmatpush1.msra.mxu0 %v46
      %78 = vmatprep.subr.mxu0 0.0
      %79 = vmatpush1.msra.mxu0 %v47
      %80 = vmatprep.subr.mxu0 0.0
      %81 = vmatpush1.msra.mxu0 0.0
      %82 = vmatprep.subr.mxu0 0.0
      %83 = vmatpush1.msra.mxu0 0.0
      %84 = vmatprep.subr.mxu0 0.0
      %85 = vmatpush1.msra.mxu0 0.0
      %86 = vmatprep.subr.mxu0 0.0
      %87 = vmatpush1.msra.mxu0 0.0
      %88 = vmatprep.subr.mxu0 0.0
      %89 = vmatpush1.msra.mxu0 0.0
      %90 = vmatprep.subr.mxu0 0.0
      %91 = vmatpush1.msra.mxu0 0.0
      %92 = vmatprep.subr.mxu0 0.0
      %93 = vmatpush1.msra.mxu0 0.0
      %94 = vmatprep.subr.mxu0 0.0
      %95 = vmatpush1.msra.mxu0 0.0
      %96 = vmatprep.subr.mxu0 0.0
      %97 = vmatpush1.msra.mxu0 0.0
      %98 = vmatprep.subr.mxu0 0.0
      %99 = vmatpush1.msra.mxu0 0.0
      %100 = vmatprep.subr.mxu0 0.0
      %101 = vmatpush1.msra.mxu0 0.0
      %102 = vmatprep.subr.mxu0 0.0
      %103 = vmatpush1.msra.mxu0 0.0
      %104 = vmatprep.subr.mxu0 0.0
      %105 = vmatpush1.msra.mxu0 0.0
      %106 = vmatprep.subr.mxu0 0.0
      %107 = vmatpush1.msra.mxu0 0.0
      %108 = vmatprep.subr.mxu0 0.0
      %109 = vmatpush1.msra.mxu0 0.0
      %110 = vmatprep.subr.mxu0 0.0
      %111 = vmatpush1.msra.mxu0 0.0
      %112 = vmatprep.mubr.f32.mxu0 0.0
      %113 = vmatmul.mubr.f32.gmra.mrb[0].mxu0 %v31
      %v114 = vpop.f32.mrb[0].mxu0
      %v115 = vadd.f32 0.0, %v114
      %v116 = vpop.f32.mrb[0].mxu0
      %117 = vdwg.mxu0
      %v118 = vld [vmem:[%s2] sm:$0x1]
      %v119 = vld [vmem:[%s3] sm:$0x1]
      %v120 = vrot.slane %v115, 4
      %v121 = vadd.f32 %v115, %v120
      %v122 = vrot.slane %v121, 2
      %v123 = vadd.f32 %v121, %v122
      %v124 = vrot.slane %v123, 1
      %v125 = vadd.f32 %v123, %v124
      %v126 = vmul.f32 %v115, %v115
      %v127 = vrot.slane %v126, 4
      %v128 = vadd.f32 %v126, %v127
      %v129 = vrot.slane %v128, 2
      %v130 = vadd.f32 %v128, %v129
      %v131 = vrot.slane %v130, 1
      %v132 = vadd.f32 %v130, %v131
      %v133 = vmul.f32 %v125, 0.125
      %v134 = vmul.f32 %v132, 0.125
      %v135 = vmul.f32 %v133, %v133
      %v136 = vsub.f32 %v134, %v135
      %v137 = vadd.f32 %v136, 1e-05
      %v138 = vrsqrt.pop %v137
      %v139 = vmul.f32 %v118, %v138
      %v140 = vmul.f32 %v133, %v139
      %v141 = vsub.f32 %v119, %v140
      %v143 = vlaneseq
      %v144 = vshrl.u32 %v143, 7
      %v145 = vsub.s32 0, %v144
      %v146 = vrot.slane %v139, %v145
      %v148 = vmul.f32 %v115, %v146
      %v150 = vlaneseq
      %v151 = vshrl.u32 %v150, 7
      %v152 = vsub.s32 0, %v151
      %v153 = vrot.slane %v141, %v152
      %v155 = vadd.f32 %v148, %v153
      %vm156 = vcmp.gt.f32.partialorder %v155, 0.0
      %v157 = vmul.f32 %v155, 0.2
      %v158 = vsel %vm156, %v155, %v157
      %s159 = smul.u32 0, 8
      %s160 = scalar_lea.vmem [#allocation2], %s159
      %161 = vst [vmem:[%s160] sm:$0xff] %v158
    $region33: #{mlp_block.1} parent=1 // pred_fallthru
      _
    %p162 = scmp.eq.s32.totalorder 0, 0
    // Predicated region
    $region34: #{mlp_block.1} parent=1 // pred_check
      %p163 = pneg %p162
    $region35: #{mlp_block.1} parent=1 // pred_check_branch
      %165 = sbr.rel (%p163) target = $region37
    $region36: #{mlp_block.1} parent=1 // pred_region
      %166 = vst [vmem:[#allocation3] sm:$0xff] 0.0
    $region37: #{mlp_block.1} parent=1 // pred_fallthru
      _
    %v167 = vld [vmem:[#allocation3] sm:$0xff]
    %s168 = smul.u32 0, 8
    %s169 = scalar_lea.vmem [#allocation2], %s168
    %v170 = vld [vmem:[%s169] sm:$0xff]
    %v171 = vld [vmem:[%s4] sm:$0xff]
    %v172 = vld [vmem:[%s4 + $0x8] sm:$0xff]
    %v173 = vld [vmem:[%s4 + $0x10] sm:$0xff]
    %v174 = vld [vmem:[%s4 + $0x18] sm:$0xff]
    %v175 = vld [vmem:[%s4 + $0x20] sm:$0xff]
    %v176 = vld [vmem:[%s4 + $0x28] sm:$0xff]
    %v177 = vld [vmem:[%s4 + $0x30] sm:$0xff]
    %v178 = vld [vmem:[%s4 + $0x38] sm:$0xff]
    %v179 = vld [vmem:[%s4 + $0x40] sm:$0xff]
    %v180 = vld [vmem:[%s4 + $0x48] sm:$0xff]
    %v181 = vld [vmem:[%s4 + $0x50] sm:$0xff]
    %v182 = vld [vmem:[%s4 + $0x58] sm:$0xff]
    %v183 = vld [vmem:[%s4 + $0x60] sm:$0xff]
    %v184 = vld [vmem:[%s4 + $0x68] sm:$0xff]
    %v185 = vld [vmem:[%s4 + $0x70] sm:$0xff]
    %v186 = vld [vmem:[%s4 + $0x78] sm:$0xff]
    %187 = vmatprep.subr.mxu0 0.0
    %188 = vmatpush1.msra.mxu0 %v171
    %189 = vmatprep.subr.mxu0 0.0
    %190 = vmatpush1.msra.mxu0 %v172
    %191 = vmatprep.subr.mxu0 0.0
    %192 = vmatpush1.msra.mxu0 %v173
    %193 = vmatprep.subr.mxu0 0.0
    %194 = vmatpush1.msra.mxu0 %v174
    %195 = vmatprep.subr.mxu0 0.0
    %196 = vmatpush1.msra.mxu0 %v175
    %197 = vmatprep.subr.mxu0 0.0
    %198 = vmatpush1.msra.mxu0 %v176
    %199 = vmatprep.subr.mxu0 0.0
    %200 = vmatpush1.msra.mxu0 %v177
    %201 = vmatprep.subr.mxu0 0.0
    %202 = vmatpush1.msra.mxu0 %v178
    %203 = vmatprep.subr.mxu0 0.0
    %204 = vmatpush1.msra.mxu0 %v179
    %205 = vmatprep.subr.mxu0 0.0
    %206 = vmatpush1.msra.mxu0 %v180
    %207 = vmatprep.subr.mxu0 0.0
    %208 = vmatpush1.msra.mxu0 %v181
    %209 = vmatprep.subr.mxu0 0.0
    %210 = vmatpush1.msra.mxu0 %v182
    %211 = vmatprep.subr.mxu0 0.0
    %212 = vmatpush1.msra.mxu0 %v183
    %213 = vmatprep.subr.mxu0 0.0
    %214 = vmatpush1.msra.mxu0 %v184
    %215 = vmatprep.subr.mxu0 0.0
    %216 = vmatpush1.msra.mxu0 %v185
    %217 = vmatprep.subr.mxu0 0.0
    %218 = vmatpush1.msra.mxu0 %v186
    %219 = vmatprep.subr.mxu0 0.0
    %220 = vmatpush1.msra.mxu0 0.0
    %221 = vmatprep.subr.mxu0 0.0
    %222 = vmatpush1.msra.mxu0 0.0
    %223 = vmatprep.subr.mxu0 0.0
    %224 = vmatpush1.msra.mxu0 0.0
    %225 = vmatprep.subr.mxu0 0.0
    %226 = vmatpush1.msra.mxu0 0.0
    %227 = vmatprep.subr.mxu0 0.0
    %228 = vmatpush1.msra.mxu0 0.0
    %229 = vmatprep.subr.mxu0 0.0
    %230 = vmatpush1.msra.mxu0 0.0
    %231 = vmatprep.subr.mxu0 0.0
    %232 = vmatpush1.msra.mxu0 0.0
    %233 = vmatprep.subr.mxu0 0.0
    %234 = vmatpush1.msra.mxu0 0.0
    %235 = vmatprep.subr.mxu0 0.0
    %236 = vmatpush1.msra.mxu0 0.0
    %237 = vmatprep.subr.mxu0 0.0
    %238 = vmatpush1.msra.mxu0 0.0
    %239 = vmatprep.subr.mxu0 0.0
    %240 = vmatpush1.msra.mxu0 0.0
    %241 = vmatprep.subr.mxu0 0.0
    %242 = vmatpush1.msra.mxu0 0.0
    %243 = vmatprep.subr.mxu0 0.0
    %244 = vmatpush1.msra.mxu0 0.0
    %245 = vmatprep.subr.mxu0 0.0
    %246 = vmatpush1.msra.mxu0 0.0
    %247 = vmatprep.subr.mxu0 0.0
    %248 = vmatpush1.msra.mxu0 0.0
    %249 = vmatprep.subr.mxu0 0.0
    %250 = vmatpush1.msra.mxu0 0.0
    %251 = vmatprep.mubr.f32.mxu0 0.0
    %252 = vmatmul.mubr.f32.gmra.mrb[0].mxu0 %v170
    %v253 = vpop.f32.mrb[0].mxu0
    %v254 = vadd.f32 0.0, %v253
    %v255 = vpop.f32.mrb[0].mxu0
    %256 = vdwg.mxu0
    %v257 = vadd.f32 %v167, %v254
    %258 = vst [vmem:[#allocation3] sm:$0xff] %v257
    // Predicated region
    $region38: #{mlp_block.1} parent=1 // pred_check
      %p259 = pneg %p162
    $region39: #{mlp_block.1} parent=1 // pred_check_branch
      %261 = sbr.rel (%p259) target = $region41
    $region40: #{mlp_block.1} parent=1 // pred_region
      %v262 = vld [vmem:[#allocation3] sm:$0xff]
      %v263 = vld [vmem:[%s5] sm:$0x1]
      %v264 = vld [vmem:[%s6] sm:$0x1]
      %v265 = vrot.slane %v262, 4
      %v266 = vadd.f32 %v262, %v265
      %v267 = vrot.slane %v266, 2
      %v268 = vadd.f32 %v266, %v267
      %v269 = vrot.slane %v268, 1
      %v270 = vadd.f32 %v268, %v269
      %v271 = vmul.f32 %v262, %v262
      %v272 = vrot.slane %v271, 4
      %v273 = vadd.f32 %v271, %v272
      %v274 = vrot.slane %v273, 2
      %v275 = vadd.f32 %v273, %v274
      %v276 = vrot.slane %v275, 1
      %v277 = vadd.f32 %v275, %v276
      %v278 = vmul.f32 %v270, 0.125
      %v279 = vmul.f32 %v277, 0.125
      %v280 = vmul.f32 %v278, %v278
      %v281 = vsub.f32 %v279, %v280
      %v282 = vadd.f32 %v281, 1e-05
      %v283 = vrsqrt.pop %v282
      %v284 = vmul.f32 %v263, %v283
      %v285 = vmul.f32 %v278, %v284
      %v286 = vsub.f32 %v264, %v285
      %v288 = vlaneseq
      %v289 = vshrl.u32 %v288, 7
      %v290 = vsub.s32 0, %v289
      %v291 = vrot.slane %v284, %v290
      %v293 = vmul.f32 %v262, %v291
      %v295 = vlaneseq
      %v296 = vshrl.u32 %v295, 7
      %v297 = vsub.s32 0, %v296
      %v298 = vrot.slane %v286, %v297
      %v300 = vadd.f32 %v293, %v298
      %vm301 = vcmp.gt.f32.partialorder %v300, 0.0
      %v302 = vmul.f32 %v300, 0.2
      %v303 = vsel %vm301, %v300, %v302
      %304 = vst [vmem:[#allocation4] sm:$0xff] %v303
    $region41: #{mlp_block.1} parent=1 // pred_fallthru
      _
    // Predicated region
    $region42: #{mlp_block.1} parent=1 // pred_check
      _
    $region43: #{mlp_block.1} parent=1 // pred_check_branch
      %306 = sbr.rel (0) target = $region45
    $region44: #{mlp_block.1} parent=1 // pred_region
      %s308 = ssub.s32 128, 128
      %309 = vsyncadd [#allocation5], %s308
      %s311 = sshll.u32 [#allocation4], 4
      %s312 = int_to_ptr.vmem [resolvable:$true] %s311
      %314 = dma.vmem_to_hbm [thread:$0]  %s312, 128, %s7, [#allocation5]
    $region45: #{mlp_block.1} parent=1 // pred_fallthru
      _
    // Predicated region
    $region46: #{mlp_block.1} parent=1 // pred_check
      _
    $region47: #{mlp_block.1} parent=1 // pred_check_branch
      %316 = sbr.rel (0) target = $region49
    $region48: #{mlp_block.1} parent=1 // pred_region
      %317 = dma.done [#allocation5], 128
    $region49: #{mlp_block.1} parent=1 // pred_fallthru
      _
    %318 = vsyncpa [#allocation5], 1

</llo_original>
